<compile_context>
chip_gen: v7x
topology: tpu7x:2x2x1
jax: 0.10.0
libtpu: 0.0.40
codegen_flags: <defaults>
</compile_context>

<pallas_src>
import jax
import jax.numpy as jnp
from jax.experimental import pallas as pl
from jax.experimental.pallas import tpu as pltpu

LANE = 128  # lane-dense padded hidden width


def _fused_graphsage_kernel(a_ref, x_ref, w1_ref, b1_ref, w2_ref, b2_ref, o_ref, h1_ref):
    """Two fused SAGEConv layers. Per layer: out = [A@H | H] @ [W_l ; W_r] + b  (single wide-K dot)."""
    a = a_ref[...]                                                        # [N, N]    bf16 (mean-aggregation)
    x = x_ref[...]                                                        # [N, Cin]  bf16

    # ---- layer 1: SAGEConv(in, hidden) -> ReLU -> Dropout(eval)=identity ----
    agg1 = jnp.dot(a, x, preferred_element_type=jnp.float32)              # [N, Cin]  f32
    p1 = jnp.concatenate([agg1.astype(jnp.bfloat16), x], axis=-1)         # [N, 2Cin] bf16
    z1 = jnp.dot(p1, w1_ref[...], preferred_element_type=jnp.float32)     # [N, Hp]   f32
    h1 = jnp.maximum(z1 + b1_ref[...], 0.0)
    h1_ref[...] = h1.astype(jnp.bfloat16)                                 # layer-1 activations stay on-chip

    # ---- layer 2: SAGEConv(hidden, hidden), no activation ----
    h1b = h1_ref[...]                                                     # [N, Hp]   bf16
    agg2 = jnp.dot(a, h1b, preferred_element_type=jnp.float32)            # [N, Hp]   f32
    p2 = jnp.concatenate([agg2.astype(jnp.bfloat16), h1b], axis=-1)       # [N, 2Hp]  bf16
    z2 = jnp.dot(p2, w2_ref[...], preferred_element_type=jnp.float32)     # [N, Hp]   f32
    o_ref[...] = (z2 + b2_ref[...]).astype(o_ref.dtype)                   # lane-dense (Hp=128) full-width store


def graphsage_fused_pallas(a_bf16, x_bf16, w1, b1, w2, b2):
    """a: [N,N] bf16, x: [N,Cin] bf16, w1: [2Cin,Hp] bf16, w2: [2Hp,Hp] bf16, b1/b2: [1,Hp] f32 -> [N,Hp] f32."""
    n, cin = x_bf16.shape
    hp = w1.shape[1]
    return pl.pallas_call(
        _fused_graphsage_kernel,
        out_shape=jax.ShapeDtypeStruct((n, hp), jnp.float32),
        grid=(1,),
        in_specs=[
            pl.BlockSpec((n, n), lambda i: (0, 0)),           # A   (full block; fits VMEM at this size)
            pl.BlockSpec((n, cin), lambda i: (0, 0)),         # X
            pl.BlockSpec(w1.shape, lambda i: (0, 0)),         # [W_l1 ; W_r1]  (K-stacked, lane-padded)
            pl.BlockSpec(b1.shape, lambda i: (0, 0)),         # b_l1 (padded)
            pl.BlockSpec(w2.shape, lambda i: (0, 0)),         # [W_l2 ; W_r2]
            pl.BlockSpec(b2.shape, lambda i: (0, 0)),         # b_l2 (padded)
        ],
        out_specs=pl.BlockSpec((n, hp), lambda i: (0, 0)),
        scratch_shapes=[pltpu.VMEM((n, hp), jnp.bfloat16)],   # h1 stays in VMEM between the two layers
        compiler_params=pltpu.CompilerParams(
            dimension_semantics=("arbitrary",),
            vmem_limit_bytes=32 * 1024 * 1024,
        ),
    )(a_bf16, x_bf16, w1, b1, w2, b2)


def build_mean_aggregation_matrix(edge_index, num_nodes):
    """A[i, j] = (# edges j->i) / max(in_degree(i), 1)  => (A @ X)[i] = mean of incoming messages."""
    src, dst = edge_index[0], edge_index[1]
    adj = jnp.zeros((num_nodes, num_nodes), jnp.float32).at[dst, src].add(1.0)
    deg = adj.sum(axis=1, keepdims=True)
    return adj / jnp.maximum(deg, 1.0)


def init_link_predictor_params(key, in_channels, hidden_channels):
    """Deterministic synthetic parameters for the 2-layer GraphSAGE used by LinkPredictor.forward."""
    ks = jax.random.split(key, 6)
    s1 = 1.0 / jnp.sqrt(in_channels)
    s2 = 1.0 / jnp.sqrt(hidden_channels)
    return {
        "w_l1": jax.random.uniform(ks[0], (in_channels, hidden_channels), jnp.float32, -s1, s1),
        "w_r1": jax.random.uniform(ks[1], (in_channels, hidden_channels), jnp.float32, -s1, s1),
        "b_l1": jax.random.uniform(ks[2], (1, hidden_channels), jnp.float32, -s1, s1),
        "w_l2": jax.random.uniform(ks[3], (hidden_channels, hidden_channels), jnp.float32, -s2, s2),
        "w_r2": jax.random.uniform(ks[4], (hidden_channels, hidden_channels), jnp.float32, -s2, s2),
        "b_l2": jax.random.uniform(ks[5], (1, hidden_channels), jnp.float32, -s2, s2),
    }
    # TODO(synk): self.mlp / predict_links is not part of forward(); not implemented here.


def pack_link_predictor_params(params, lane=LANE):
    """Stack W_l/W_r along K, zero-pad the hidden dim to a multiple of 128 lanes, cast weights to bf16."""
    h = params["w_l1"].shape[1]
    hp = ((h + lane - 1) // lane) * lane
    pad_h = hp - h

    def pad_cols(m):
        return jnp.pad(m, ((0, 0), (0, pad_h)))

    w1 = jnp.concatenate([pad_cols(params["w_l1"]), pad_cols(params["w_r1"])], axis=0).astype(jnp.bfloat16)
    b1 = pad_cols(params["b_l1"]).astype(jnp.float32)
    w_l2 = jnp.pad(params["w_l2"], ((0, pad_h), (0, pad_h)))
    w_r2 = jnp.pad(params["w_r2"], ((0, pad_h), (0, pad_h)))
    w2 = jnp.concatenate([w_l2, w_r2], axis=0).astype(jnp.bfloat16)
    b2 = pad_cols(params["b_l2"]).astype(jnp.float32)
    return {"w1": w1, "b1": b1, "w2": w2, "b2": b2, "hidden": h}


@jax.jit
def link_predictor_forward(params, x, a):
    packed = pack_link_predictor_params(params)
    out_padded = graphsage_fused_pallas(
        a.astype(jnp.bfloat16),
        x.astype(jnp.bfloat16),
        packed["w1"], packed["b1"], packed["w2"], packed["b2"],
    )
    return out_padded[:, : packed["hidden"]]


if __name__ == "__main__":
    key = jax.random.PRNGKey(0)
    k_x, k_e, k_p = jax.random.split(key, 3)

    num_nodes = 16
    in_channels = 8
    hidden_channels = 32
    num_edges = 40

    x = jax.random.normal(k_x, (num_nodes, in_channels), jnp.float32)
    edge_index = jax.random.randint(k_e, (2, num_edges), 0, num_nodes, dtype=jnp.int32)

    a = build_mean_aggregation_matrix(edge_index, num_nodes)
    params = init_link_predictor_params(k_p, in_channels, hidden_channels)

    out = link_predictor_forward(params, x, a)
    jax.block_until_ready(out)

    assert out.shape == (num_nodes, hidden_channels)
    assert out.dtype == jnp.float32
    print("KERNEL_OK")
</pallas_src>

<mosaic_0001>
module attributes {stable_mosaic.version = 11 : i64} {
  func.func @_fused_graphsage_kernel(%arg0: i32, %arg1: memref<16x16xbf16, #tpu.memory_space<vmem>>, %arg2: memref<16x8xbf16, #tpu.memory_space<vmem>>, %arg3: memref<16x128xbf16, #tpu.memory_space<vmem>>, %arg4: memref<1x128xf32, #tpu.memory_space<vmem>>, %arg5: memref<256x128xbf16, #tpu.memory_space<vmem>>, %arg6: memref<1x128xf32, #tpu.memory_space<vmem>>, %arg7: memref<16x128xf32, #tpu.memory_space<vmem>>, %arg8: memref<16x128xbf16, #tpu.memory_space<vmem>>) attributes {dimension_semantics = [#tpu.dimension_semantics<arbitrary>], iteration_bounds = array<i64: 1>, scalar_prefetch = 0 : i64, scratch_operands = 1 : i64, tpu.core_type = #tpu.core_type<tc>, window_params = [{pipeline_mode = #tpu.pipeline_mode<synchronous>, transform_indices = @transform_0, window_bounds = array<i64: 16, 16>}, {pipeline_mode = #tpu.pipeline_mode<synchronous>, transform_indices = @transform_1, window_bounds = array<i64: 16, 8>}, {pipeline_mode = #tpu.pipeline_mode<synchronous>, transform_indices = @transform_2, window_bounds = array<i64: 16, 128>}, {pipeline_mode = #tpu.pipeline_mode<synchronous>, transform_indices = @transform_3, window_bounds = array<i64: 1, 128>}, {pipeline_mode = #tpu.pipeline_mode<synchronous>, transform_indices = @transform_4, window_bounds = array<i64: 256, 128>}, {pipeline_mode = #tpu.pipeline_mode<synchronous>, transform_indices = @transform_5, window_bounds = array<i64: 1, 128>}, {pipeline_mode = #tpu.pipeline_mode<synchronous>, transform_indices = @transform_6, window_bounds = array<i64: 16, 128>}]} {
    %c0 = arith.constant 0 : index
    %c0_0 = arith.constant 0 : index
    %0 = vector.load %arg1[%c0, %c0_0] : memref<16x16xbf16, #tpu.memory_space<vmem>>, vector<16x16xbf16>
    %c0_1 = arith.constant 0 : index
    %c0_2 = arith.constant 0 : index
    %1 = vector.load %arg2[%c0_1, %c0_2] : memref<16x8xbf16, #tpu.memory_space<vmem>>, vector<16x8xbf16>
    %cst = arith.constant dense<0.000000e+00> : vector<16x8xf32>
    %2 = tpu.matmul %0, %1, %cst {dimension_numbers = #tpu.dot_dimension_numbers<[1], [0], [0], [1], [0, 0, 1, 1], [], []>} : vector<16x16xbf16>, vector<16x8xbf16>, vector<16x8xf32> -> vector<16x8xf32>
    %3 = arith.truncf %2 : vector<16x8xf32> to vector<16x8xbf16>
    %4 = tpu.concatenate %3, %1 in 1 : vector<16x8xbf16>, vector<16x8xbf16> -> vector<16x16xbf16>
    %c0_3 = arith.constant 0 : index
    %c0_4 = arith.constant 0 : index
    %5 = vector.load %arg3[%c0_3, %c0_4] : memref<16x128xbf16, #tpu.memory_space<vmem>>, vector<16x128xbf16>
    %cst_5 = arith.constant dense<0.000000e+00> : vector<16x128xf32>
    %6 = tpu.matmul %4, %5, %cst_5 {dimension_numbers = #tpu.dot_dimension_numbers<[1], [0], [0], [1], [0, 0, 1, 1], [], []>} : vector<16x16xbf16>, vector<16x128xbf16>, vector<16x128xf32> -> vector<16x128xf32>
    %c0_6 = arith.constant 0 : index
    %c0_7 = arith.constant 0 : index
    %7 = vector.load %arg4[%c0_6, %c0_7] : memref<1x128xf32, #tpu.memory_space<vmem>>, vector<1x128xf32>
    %8 = vector.broadcast %7 : vector<1x128xf32> to vector<16x128xf32>
    %9 = arith.addf %6, %8 : vector<16x128xf32>
    %cst_8 = arith.constant 0.000000e+00 : f32
    %10 = vector.broadcast %cst_8 : f32 to vector<16x128xf32>
    %11 = arith.maximumf %9, %10 : vector<16x128xf32>
    %12 = arith.truncf %11 : vector<16x128xf32> to vector<16x128xbf16>
    %c0_9 = arith.constant 0 : index
    %c0_10 = arith.constant 0 : index
    %13 = vector.load %arg8[%c0_9, %c0_10] : memref<16x128xbf16, #tpu.memory_space<vmem>>, vector<16x128xbf16>
    tpu.vector_store %arg8[%c0_9, %c0_10], %12 {strides = array<i32>} : memref<16x128xbf16, #tpu.memory_space<vmem>>, vector<16x128xbf16>,
    %c0_11 = arith.constant 0 : index
    %c0_12 = arith.constant 0 : index
    %14 = vector.load %arg8[%c0_11, %c0_12] : memref<16x128xbf16, #tpu.memory_space<vmem>>, vector<16x128xbf16>
    %cst_13 = arith.constant dense<0.000000e+00> : vector<16x128xf32>
    %15 = tpu.matmul %0, %14, %cst_13 {dimension_numbers = #tpu.dot_dimension_numbers<[1], [0], [0], [1], [0, 0, 1, 1], [], []>} : vector<16x16xbf16>, vector<16x128xbf16>, vector<16x128xf32> -> vector<16x128xf32>
    %16 = arith.truncf %15 : vector<16x128xf32> to vector<16x128xbf16>
    %17 = tpu.concatenate %16, %14 in 1 : vector<16x128xbf16>, vector<16x128xbf16> -> vector<16x256xbf16>
    %c0_14 = arith.constant 0 : index
    %c0_15 = arith.constant 0 : index
    %18 = vector.load %arg5[%c0_14, %c0_15] : memref<256x128xbf16, #tpu.memory_space<vmem>>, vector<256x128xbf16>
    %cst_16 = arith.constant dense<0.000000e+00> : vector<16x128xf32>
    %19 = tpu.matmul %17, %18, %cst_16 {dimension_numbers = #tpu.dot_dimension_numbers<[1], [0], [0], [1], [0, 0, 1, 1], [], []>} : vector<16x256xbf16>, vector<256x128xbf16>, vector<16x128xf32> -> vector<16x128xf32>
    %c0_17 = arith.constant 0 : index
    %c0_18 = arith.constant 0 : index
    %20 = vector.load %arg6[%c0_17, %c0_18] : memref<1x128xf32, #tpu.memory_space<vmem>>, vector<1x128xf32>
    %21 = vector.broadcast %20 : vector<1x128xf32> to vector<16x128xf32>
    %22 = arith.addf %19, %21 : vector<16x128xf32>
    %c0_19 = arith.constant 0 : index
    %c0_20 = arith.constant 0 : index
    %23 = vector.load %arg7[%c0_19, %c0_20] : memref<16x128xf32, #tpu.memory_space<vmem>>, vector<16x128xf32>
    tpu.vector_store %arg7[%c0_19, %c0_20], %22 {strides = array<i32>} : memref<16x128xf32, #tpu.memory_space<vmem>>, vector<16x128xf32>,
    return
  }
  func.func @transform_0(%arg0: i32) -> (i32, i32) {
    %c0_i32 = arith.constant 0 : i32
    %c0_i32_0 = arith.constant 0 : i32
    %c0_i32_1 = arith.constant 0 : i32
    return %c0_i32, %c0_i32_0 : i32, i32
  }
  func.func @transform_1(%arg0: i32) -> (i32, i32) {
    %c0_i32 = arith.constant 0 : i32
    %c0_i32_0 = arith.constant 0 : i32
    %c0_i32_1 = arith.constant 0 : i32
    return %c0_i32, %c0_i32_0 : i32, i32
  }
  func.func @transform_2(%arg0: i32) -> (i32, i32) {
    %c0_i32 = arith.constant 0 : i32
    %c0_i32_0 = arith.constant 0 : i32
    %c0_i32_1 = arith.constant 0 : i32
    return %c0_i32, %c0_i32_0 : i32, i32
  }
  func.func @transform_3(%arg0: i32) -> (i32, i32) {
    %c0_i32 = arith.constant 0 : i32
    %c0_i32_0 = arith.constant 0 : i32
    %c0_i32_1 = arith.constant 0 : i32
    return %c0_i32, %c0_i32_0 : i32, i32
  }
  func.func @transform_4(%arg0: i32) -> (i32, i32) {
    %c0_i32 = arith.constant 0 : i32
    %c0_i32_0 = arith.constant 0 : i32
    %c0_i32_1 = arith.constant 0 : i32
    return %c0_i32, %c0_i32_0 : i32, i32
  }
  func.func @transform_5(%arg0: i32) -> (i32, i32) {
    %c0_i32 = arith.constant 0 : i32
    %c0_i32_0 = arith.constant 0 : i32
    %c0_i32_1 = arith.constant 0 : i32
    return %c0_i32, %c0_i32_0 : i32, i32
  }
  func.func @transform_6(%arg0: i32) -> (i32, i32) {
    %c0_i32 = arith.constant 0 : i32
    %c0_i32_0 = arith.constant 0 : i32
    %c0_i32_1 = arith.constant 0 : i32
    return %c0_i32, %c0_i32_0 : i32, i32
  }
}

</mosaic_0001>

<llo_original>
// kernel: link_predictor_forward.1
$region0: #{link_predictor_forward.1}
  #allocation0 [shape = 'u32[]', space=smem, size = 0x4, offset = 0x4, fixed_abs, tag = 'smem constant byte address 0x4 - core index']
  #allocation1 [shape = 'u32[144,128]{1,0:T(1,128)}', space=vmem, size = 0x12000, scoped, tag = 'internal scratch']
  #allocation2 [shape = 'bf16[16,128]{1,0:T(16,128)(2,1)}', space=vmem, size = 0x1000, scoped, tag = 'scratch operand']
  %s0 = inlined_call_operand.vmem [shape: bf16[16,16], index: 0, kind: input, shape index: {}]
  %s1 = inlined_call_operand.vmem [shape: bf16[16,8], index: 1, kind: input, shape index: {}]
  %s2 = inlined_call_operand.vmem [shape: bf16[16,128], index: 2, kind: input, shape index: {}]
  %s3 = inlined_call_operand.vmem [shape: f32[1,128], index: 3, kind: input, shape index: {}]
  %s4 = inlined_call_operand.vmem [shape: bf16[256,128], index: 4, kind: input, shape index: {}]
  %s5 = inlined_call_operand.vmem [shape: f32[1,128], index: 5, kind: input, shape index: {}]
  %s6 = inlined_call_operand.hbm [shape: f32[16,128], index: 6, kind: output, shape index: {}]
  %s7 = sld [smem:[#allocation0]]
  $region34: #{link_predictor_forward.1} parent=0
    _
  %s9 = ssub.s32 1, %s7
  %s10 = scalar_select 0, %s9, %s7
  $region1: #{link_predictor_forward.1} parent=0
    #allocation3 [shape = 'u8[8192]{0}', space=vmem, size = 0x2000, scoped, tag = 'output window, operand 0, single buffered']
    #allocation4 [shape = 's32[1]{0}', space=sflag, size = 0x4, scoped, tag = 'scoped memory for link_predictor_forward.1']
    %11 = vsyncpa [#allocation4], 0
    // Predicated region
    $region2: #{link_predictor_forward.1} parent=1 // pred_check
      _
    $region3: #{link_predictor_forward.1} parent=1 // pred_check_branch
      %13 = sbr.rel (0) target = $region5
    $region4: #{link_predictor_forward.1} parent=1 // pred_region
      _
    $region5: #{link_predictor_forward.1} parent=1 // pred_fallthru
      _
    // Predicated region
    $region6: #{link_predictor_forward.1} parent=1 // pred_check
      _
    $region7: #{link_predictor_forward.1} parent=1 // pred_check_branch
      %15 = sbr.rel (0) target = $region9
    $region8: #{link_predictor_forward.1} parent=1 // pred_region
      _
    $region9: #{link_predictor_forward.1} parent=1 // pred_fallthru
      _
    // Predicated region
    $region10: #{link_predictor_forward.1} parent=1 // pred_check
      _
    $region11: #{link_predictor_forward.1} parent=1 // pred_check_branch
      %17 = sbr.rel (0) target = $region13
    $region12: #{link_predictor_forward.1} parent=1 // pred_region
      _
    $region13: #{link_predictor_forward.1} parent=1 // pred_fallthru
      _
    // Predicated region
    $region14: #{link_predictor_forward.1} parent=1 // pred_check
      _
    $region15: #{link_predictor_forward.1} parent=1 // pred_check_branch
      %19 = sbr.rel (0) target = $region17
    $region16: #{link_predictor_forward.1} parent=1 // pred_region
      _
    $region17: #{link_predictor_forward.1} parent=1 // pred_fallthru
      _
    // Predicated region
    $region18: #{link_predictor_forward.1} parent=1 // pred_check
      _
    $region19: #{link_predictor_forward.1} parent=1 // pred_check_branch
      %21 = sbr.rel (0) target = $region21
    $region20: #{link_predictor_forward.1} parent=1 // pred_region
      _
    $region21: #{link_predictor_forward.1} parent=1 // pred_fallthru
      _
    // Predicated region
    $region22: #{link_predictor_forward.1} parent=1 // pred_check
      _
    $region23: #{link_predictor_forward.1} parent=1 // pred_check_branch
      %23 = sbr.rel (0) target = $region25
    $region24: #{link_predictor_forward.1} parent=1 // pred_region
      _
    $region25: #{link_predictor_forward.1} parent=1 // pred_fallthru
      _
    %v25 = vld [vmem:[%s0] sm:$0xf]
    %v26 = vld [vmem:[%s0 + $0x4] sm:$0xf]
    %v27 = vld [vmem:[%s1] sm:$0xf]
    %v28 = vld [vmem:[%s1 + $0x4] sm:$0xf]
    %v31 = vunpack.c.l.b16 %v25
    %v32 = vunpack.c.l.b16 %v26
    %v33 = vpack.c.b16 %v32, %v31
    %v36 = vunpack.c.l.b16 %v27
    %v37 = vunpack.c.l.b16 %v28
    %v38 = vpack.c.b16 %v37, %v36
    %vm40 = vcmask 130048
    %v42 = vsel %vm40, %v33, 0
    %44 = vmatprep.subr.bf16.mxu0 0
    %45 = vmatpush1.bf16.msra.mxu0 %v38
    %46 = vmatprep.subr.bf16.mxu0 0
    %47 = vmatpush1.bf16.msra.mxu0 0
    %48 = vmatprep.subr.bf16.mxu0 0
    %49 = vmatpush1.bf16.msra.mxu0 0
    %50 = vmatprep.subr.bf16.mxu0 0
    %51 = vmatpush1.bf16.msra.mxu0 0
    %52 = vmatprep.subr.bf16.mxu0 0
    %53 = vmatpush1.bf16.msra.mxu0 0
    %54 = vmatprep.subr.bf16.mxu0 0
    %55 = vmatpush1.bf16.msra.mxu0 0
    %56 = vmatprep.subr.bf16.mxu0 0
    %57 = vmatpush1.bf16.msra.mxu0 0
    %58 = vmatprep.subr.bf16.mxu0 0
    %59 = vmatpush1.bf16.msra.mxu0 0
    %60 = vmatprep.subr.bf16.mxu0 0
    %61 = vmatpush1.bf16.msra.mxu0 0
    %62 = vmatprep.subr.bf16.mxu0 0
    %63 = vmatpush1.bf16.msra.mxu0 0
    %64 = vmatprep.subr.bf16.mxu0 0
    %65 = vmatpush1.bf16.msra.mxu0 0
    %66 = vmatprep.subr.bf16.mxu0 0
    %67 = vmatpush1.bf16.msra.mxu0 0
    %68 = vmatprep.subr.bf16.mxu0 0
    %69 = vmatpush1.bf16.msra.mxu0 0
    %70 = vmatprep.subr.bf16.mxu0 0
    %71 = vmatpush1.bf16.msra.mxu0 0
    %72 = vmatprep.subr.bf16.mxu0 0
    %73 = vmatpush1.bf16.msra.mxu0 0
    %74 = vmatprep.subr.bf16.mxu0 0
    %75 = vmatpush1.bf16.msra.mxu0 0
    %76 = vmatprep.mubr.bf16.mxu0 0
    %77 = vmatmul.mubr.bf16.gmra.mrb[0].mxu0 %v42
    %v78 = vpop.f32.mrb[0].mxu0
    %v79 = vadd.f32 0.0, %v78
    %v80 = vpop.f32.mrb[0].mxu0
    %v81 = vpop.f32.mrb[0].mxu0
    %v82 = vadd.f32 0.0, %v81
    %v83 = vpop.f32.mrb[0].mxu0
    %84 = vdwg.mxu0
    %v85 = vpack.c.bf16 %v82, %v79
    %86 = vrot.lane.b32.xlu0 %v38, 8
    %v87 = vpop.permute.xlu0 %86
    %vm88 = vcmask 64512
    %v91 = vsel %vm88, %v85, %v87
    %v92 = vld [vmem:[%s2] sm:$0xf]
    %v93 = vld [vmem:[%s2 + $0x4] sm:$0xf]
    %v94 = vld [vmem:[%s3] sm:$0x1]
    %v96 = vlaneseq
    %v97 = vshrl.u32 %v96, 7
    %v98 = vsub.s32 0, %v97
    %v99 = vrot.slane %v94, %v98
    %v103 = vunpack.c.l.b16 %v92
    %v104 = vunpack.c.l.b16 %v93
    %v105 = vpack.c.b16 %v104, %v103
    %v107 = vsel %vm40, %v91, 0
    %109 = vmatprep.subr.bf16.mxu0 0
    %110 = vmatpush1.bf16.msra.mxu0 %v105
    %111 = vmatprep.subr.bf16.mxu0 0
    %112 = vmatpush1.bf16.msra.mxu0 0
    %113 = vmatprep.subr.bf16.mxu0 0
    %114 = vmatpush1.bf16.msra.mxu0 0
    %115 = vmatprep.subr.bf16.mxu0 0
    %116 = vmatpush1.bf16.msra.mxu0 0
    %117 = vmatprep.subr.bf16.mxu0 0
    %118 = vmatpush1.bf16.msra.mxu0 0
    %119 = vmatprep.subr.bf16.mxu0 0
    %120 = vmatpush1.bf16.msra.mxu0 0
    %121 = vmatprep.subr.bf16.mxu0 0
    %122 = vmatpush1.bf16.msra.mxu0 0
    %123 = vmatprep.subr.bf16.mxu0 0
    %124 = vmatpush1.bf16.msra.mxu0 0
    %125 = vmatprep.subr.bf16.mxu0 0
    %126 = vmatpush1.bf16.msra.mxu0 0
    %127 = vmatprep.subr.bf16.mxu0 0
    %128 = vmatpush1.bf16.msra.mxu0 0
    %129 = vmatprep.subr.bf16.mxu0 0
    %130 = vmatpush1.bf16.msra.mxu0 0
    %131 = vmatprep.subr.bf16.mxu0 0
    %132 = vmatpush1.bf16.msra.mxu0 0
    %133 = vmatprep.subr.bf16.mxu0 0
    %134 = vmatpush1.bf16.msra.mxu0 0
    %135 = vmatprep.subr.bf16.mxu0 0
    %136 = vmatpush1.bf16.msra.mxu0 0
    %137 = vmatprep.subr.bf16.mxu0 0
    %138 = vmatpush1.bf16.msra.mxu0 0
    %139 = vmatprep.subr.bf16.mxu0 0
    %140 = vmatpush1.bf16.msra.mxu0 0
    %141 = vmatprep.mubr.bf16.mxu0 0
    %142 = vmatmul.mubr.bf16.gmra.mrb[0].mxu0 %v107
    %v143 = vpop.f32.mrb[0].mxu0
    %v144 = vadd.f32 %v99, %v143
    %v145 = vpop.f32.mrb[0].mxu0
    %v146 = vpop.f32.mrb[0].mxu0
    %v147 = vadd.f32 %v99, %v146
    %v148 = vpop.f32.mrb[0].mxu0
    %149 = vdwg.mxu0
    %v150 = vmax.f32 %v144, 0.0
    %v151 = vmax.f32 %v147, 0.0
    %v152 = vpack.c.bf16 %v151, %v150
    %153 = vst [vmem:[#allocation2] sm:$0xff] %v152
    %v154 = vld [vmem:[#allocation2] sm:$0xff]
    %155 = vmatprep.subr.bf16.mxu0 0
    %156 = vmatpush1.bf16.msra.mxu0 %v154
    %157 = vmatprep.subr.bf16.mxu0 0
    %158 = vmatpush1.bf16.msra.mxu0 0
    %159 = vmatprep.subr.bf16.mxu0 0
    %160 = vmatpush1.bf16.msra.mxu0 0
    %161 = vmatprep.subr.bf16.mxu0 0
    %162 = vmatpush1.bf16.msra.mxu0 0
    %163 = vmatprep.subr.bf16.mxu0 0
    %164 = vmatpush1.bf16.msra.mxu0 0
    %165 = vmatprep.subr.bf16.mxu0 0
    %166 = vmatpush1.bf16.msra.mxu0 0
    %167 = vmatprep.subr.bf16.mxu0 0
    %168 = vmatpush1.bf16.msra.mxu0 0
    %169 = vmatprep.subr.bf16.mxu0 0
    %170 = vmatpush1.bf16.msra.mxu0 0
    %171 = vmatprep.subr.bf16.mxu0 0
    %172 = vmatpush1.bf16.msra.mxu0 0
    %173 = vmatprep.subr.bf16.mxu0 0
    %174 = vmatpush1.bf16.msra.mxu0 0
    %175 = vmatprep.subr.bf16.mxu0 0
    %176 = vmatpush1.bf16.msra.mxu0 0
    %177 = vmatprep.subr.bf16.mxu0 0
    %178 = vmatpush1.bf16.msra.mxu0 0
    %179 = vmatprep.subr.bf16.mxu0 0
    %180 = vmatpush1.bf16.msra.mxu0 0
    %181 = vmatprep.subr.bf16.mxu0 0
    %182 = vmatpush1.bf16.msra.mxu0 0
    %183 = vmatprep.subr.bf16.mxu0 0
    %184 = vmatpush1.bf16.msra.mxu0 0
    %185 = vmatprep.subr.bf16.mxu0 0
    %186 = vmatpush1.bf16.msra.mxu0 0
    %187 = vmatprep.mubr.bf16.mxu0 0
    %188 = vmatmul.mubr.bf16.gmra.mrb[0].mxu0 %v42
    %v189 = vpop.f32.mrb[0].mxu0
    %v190 = vadd.f32 0.0, %v189
    %v191 = vpop.f32.mrb[0].mxu0
    %v192 = vpop.f32.mrb[0].mxu0
    %v193 = vadd.f32 0.0, %v192
    %v194 = vpop.f32.mrb[0].mxu0
    %195 = vdwg.mxu0
    %v196 = vpack.c.bf16 %v193, %v190
    %v197 = vld [vmem:[%s4] sm:$0xf]
    %v198 = vld [vmem:[%s4 + $0x4] sm:$0xf]
    %v199 = vld [vmem:[%s4 + $0x8] sm:$0xf]
    %v200 = vld [vmem:[%s4 + $0xc] sm:$0xf]
    %v201 = vld [vmem:[%s4 + $0x10] sm:$0xf]
    %v202 = vld [vmem:[%s4 + $0x14] sm:$0xf]
    %v203 = vld [vmem:[%s4 + $0x18] sm:$0xf]
    %v204 = vld [vmem:[%s4 + $0x1c] sm:$0xf]
    %v205 = vld [vmem:[%s4 + $0x20] sm:$0xf]
    %v206 = vld [vmem:[%s4 + $0x24] sm:$0xf]
    %v207 = vld [vmem:[%s4 + $0x28] sm:$0xf]
    %v208 = vld [vmem:[%s4 + $0x2c] sm:$0xf]
    %v209 = vld [vmem:[%s4 + $0x30] sm:$0xf]
    %v210 = vld [vmem:[%s4 + $0x34] sm:$0xf]
    %v211 = vld [vmem:[%s4 + $0x38] sm:$0xf]
    %v212 = vld [vmem:[%s4 + $0x3c] sm:$0xf]
    %v213 = vld [vmem:[%s4 + $0x40] sm:$0xf]
    %v214 = vld [vmem:[%s4 + $0x44] sm:$0xf]
    %v215 = vld [vmem:[%s4 + $0x48] sm:$0xf]
    %v216 = vld [vmem:[%s4 + $0x4c] sm:$0xf]
    %v217 = vld [vmem:[%s4 + $0x50] sm:$0xf]
    %v218 = vld [vmem:[%s4 + $0x54] sm:$0xf]
    %v219 = vld [vmem:[%s4 + $0x58] sm:$0xf]
    %v220 = vld [vmem:[%s4 + $0x5c] sm:$0xf]
    %v221 = vld [vmem:[%s4 + $0x60] sm:$0xf]
    %v222 = vld [vmem:[%s4 + $0x64] sm:$0xf]
    %v223 = vld [vmem:[%s4 + $0x68] sm:$0xf]
    %v224 = vld [vmem:[%s4 + $0x6c] sm:$0xf]
    %v225 = vld [vmem:[%s4 + $0x70] sm:$0xf]
    %v226 = vld [vmem:[%s4 + $0x74] sm:$0xf]
    %v227 = vld [vmem:[%s4 + $0x78] sm:$0xf]
    %v228 = vld [vmem:[%s4 + $0x7c] sm:$0xf]
    %v229 = vld [vmem:[%s5] sm:$0x1]
    %v231 = vlaneseq
    %v232 = vshrl.u32 %v231, 7
    %v233 = vsub.s32 0, %v232
    %v234 = vrot.slane %v229, %v233
    %v268 = vunpack.c.l.b16 %v197
    %v269 = vunpack.c.l.b16 %v198
    %v270 = vunpack.c.l.b16 %v199
    %v271 = vunpack.c.l.b16 %v200
    %v272 = vunpack.c.l.b16 %v201
    %v273 = vunpack.c.l.b16 %v202
    %v274 = vunpack.c.l.b16 %v203
    %v275 = vunpack.c.l.b16 %v204
    %v276 = vunpack.c.l.b16 %v205
    %v277 = vunpack.c.l.b16 %v206
    %v278 = vunpack.c.l.b16 %v207
    %v279 = vunpack.c.l.b16 %v208
    %v280 = vunpack.c.l.b16 %v209
    %v281 = vunpack.c.l.b16 %v210
    %v282 = vunpack.c.l.b16 %v211
    %v283 = vunpack.c.l.b16 %v212
    %v284 = vunpack.c.l.b16 %v213
    %v285 = vunpack.c.l.b16 %v214
    %v286 = vunpack.c.l.b16 %v215
    %v287 = vunpack.c.l.b16 %v216
    %v288 = vunpack.c.l.b16 %v217
    %v289 = vunpack.c.l.b16 %v218
    %v290 = vunpack.c.l.b16 %v219
    %v291 = vunpack.c.l.b16 %v220
    %v292 = vunpack.c.l.b16 %v221
    %v293 = vunpack.c.l.b16 %v222
    %v294 = vunpack.c.l.b16 %v223
    %v295 = vunpack.c.l.b16 %v224
    %v296 = vunpack.c.l.b16 %v225
    %v297 = vunpack.c.l.b16 %v226
    %v298 = vunpack.c.l.b16 %v227
    %v299 = vunpack.c.l.b16 %v228
    %v300 = vpack.c.b16 %v269, %v268
    %v301 = vpack.c.b16 %v271, %v270
    %v302 = vpack.c.b16 %v273, %v272
    %v303 = vpack.c.b16 %v275, %v274
    %v304 = vpack.c.b16 %v277, %v276
    %v305 = vpack.c.b16 %v279, %v278
    %v306 = vpack.c.b16 %v281, %v280
    %v307 = vpack.c.b16 %v283, %v282
    %v308 = vpack.c.b16 %v285, %v284
    %v309 = vpack.c.b16 %v287, %v286
    %v310 = vpack.c.b16 %v289, %v288
    %v311 = vpack.c.b16 %v291, %v290
    %v312 = vpack.c.b16 %v293, %v292
    %v313 = vpack.c.b16 %v295, %v294
    %v314 = vpack.c.b16 %v297, %v296
    %v315 = vpack.c.b16 %v299, %v298
    %332 = vmatprep.subr.bf16.mxu0 0
    %333 = vmatpush1.bf16.msra.mxu0 %v300
    %334 = vmatprep.subr.bf16.mxu0 0
    %335 = vmatpush1.bf16.msra.mxu0 %v301
    %336 = vmatprep.subr.bf16.mxu0 0
    %337 = vmatpush1.bf16.msra.mxu0 %v302
    %338 = vmatprep.subr.bf16.mxu0 0
    %339 = vmatpush1.bf16.msra.mxu0 %v303
    %340 = vmatprep.subr.bf16.mxu0 0
    %341 = vmatpush1.bf16.msra.mxu0 %v304
    %342 = vmatprep.subr.bf16.mxu0 0
    %343 = vmatpush1.bf16.msra.mxu0 %v305
    %344 = vmatprep.subr.bf16.mxu0 0
    %345 = vmatpush1.bf16.msra.mxu0 %v306
    %346 = vmatprep.subr.bf16.mxu0 0
    %347 = vmatpush1.bf16.msra.mxu0 %v307
    %348 = vmatprep.subr.bf16.mxu0 0
    %349 = vmatpush1.bf16.msra.mxu0 %v308
    %350 = vmatprep.subr.bf16.mxu0 0
    %351 = vmatpush1.bf16.msra.mxu0 %v309
    %352 = vmatprep.subr.bf16.mxu0 0
    %353 = vmatpush1.bf16.msra.mxu0 %v310
    %354 = vmatprep.subr.bf16.mxu0 0
    %355 = vmatpush1.bf16.msra.mxu0 %v311
    %356 = vmatprep.subr.bf16.mxu0 0
    %357 = vmatpush1.bf16.msra.mxu0 %v312
    %358 = vmatprep.subr.bf16.mxu0 0
    %359 = vmatpush1.bf16.msra.mxu0 %v313
    %360 = vmatprep.subr.bf16.mxu0 0
    %361 = vmatpush1.bf16.msra.mxu0 %v314
    %362 = vmatprep.subr.bf16.mxu0 0
    %363 = vmatpush1.bf16.msra.mxu0 %v315
    %364 = vmatprep.mubr.bf16.mxu0 %v154
    %365 = vmatmul.mubr.bf16.gmra.mrb[0].mxu0 %v196
    %v366 = vpop.f32.mrb[0].mxu0
    %v367 = vadd.f32 %v234, %v366
    %v368 = vpop.f32.mrb[0].mxu0
    %v369 = vpop.f32.mrb[0].mxu0
    %v370 = vadd.f32 %v234, %v369
    %v371 = vpop.f32.mrb[0].mxu0
    %372 = vdwg.mxu0
    %373 = vst [vmem:[#allocation3] sm:$0xff] %v367
    %374 = vst [vmem:[#allocation3 + $0x8] sm:$0xff] %v370
    // Predicated region
    $region26: #{link_predictor_forward.1} parent=1 // pred_check
      _
    $region27: #{link_predictor_forward.1} parent=1 // pred_check_branch
      %376 = sbr.rel (0) target = $region29
    $region28: #{link_predictor_forward.1} parent=1 // pred_region
      %s378 = ssub.s32 256, 256
      %379 = vsyncadd [#allocation4], %s378
      %s380 = sshll.u32 [#allocation3], 4
      %s381 = int_to_ptr.vmem [resolvable:$true] %s380
      %386 = dma.vmem_to_hbm [thread:$0]  %s381, 256, %s6, [#allocation4], 128, 128, 8
    $region29: #{link_predictor_forward.1} parent=1 // pred_fallthru
      _
    // Predicated region
    $region30: #{link_predictor_forward.1} parent=1 // pred_check
      _
    $region31: #{link_predictor_forward.1} parent=1 // pred_check_branch
      %388 = sbr.rel (0) target = $region33
    $region32: #{link_predictor_forward.1} parent=1 // pred_region
      %389 = dma.done [#allocation4], 256
    $region33: #{link_predictor_forward.1} parent=1 // pred_fallthru
      _
    %390 = vsyncpa [#allocation4], 1

</llo_original>
